<compile_context>
chip_gen: v6e
topology: v6e:2x2x1
jax: 0.10.0
libtpu: 0.0.40
codegen_flags: <defaults>
</compile_context>

<pallas_src>
import numpy as np
import jax
import jax.numpy as jnp
from jax.experimental import pallas as pl
from jax.experimental.pallas import tpu as pltpu


_K = 7  # spatial conv kernel size
_P = 3  # spatial conv padding


def _sigmoid(x):
    # exp goes to the EUP; the divide only touches the tiny (nb,C)/(nb,HW)
    # tensors, so it is kept exact (pl.reciprocal(approx=True) would also work
    # but buys essentially nothing here and adds numerical drift).
    return 1.0 / (1.0 + jnp.exp(-x))


def _cbam_kernel(x_ref, w1t_ref, w2t_ref, m_ref, cb_ref, out_ref):
    # x_ref / out_ref : (nb, C, H*W) lane-dense batch block (input dtype)
    # w1t_ref         : (C, hidden)  MLP[0].weight transposed (f32)
    # w2t_ref         : (hidden, C)  MLP[2].weight transposed (f32)
    # m_ref           : (2*HW, HW)   7x7 conv + zero padding as a dense matrix
    # cb_ref          : (1,)         conv bias (SMEM scalar)
    nb = x_ref.shape[0]

    x = x_ref[...]                                   # native dtype
    xf = x.astype(jnp.float32)

    # ---------------- channel attention (MXU MLP) ----------------
    avg = jnp.mean(xf, axis=-1)                      # (nb, C)  lane reduce
    mx = jnp.max(xf, axis=-1)                        # (nb, C)
    pooled = jnp.concatenate([avg, mx], axis=0)      # (2*nb, C)
    h = jnp.dot(pooled, w1t_ref[...],
                preferred_element_type=jnp.float32)  # (2*nb, hidden)
    h = jnp.maximum(h, 0.0)                          # ReLU
    o = jnp.dot(h, w2t_ref[...],
                preferred_element_type=jnp.float32)  # (2*nb, C)
    w_c = _sigmoid(o[:nb] + o[nb:])                  # (nb, C)

    x_c = x * w_c[:, :, None].astype(x.dtype)        # (nb, C, HW) native dtype

    # ---------------- spatial attention (MXU conv) ----------------
    x_cf = x_c.astype(jnp.float32)
    mean_s = jnp.mean(x_cf, axis=1)                  # (nb, HW)  sublane reduce
    max_s = jnp.max(x_cf, axis=1)                    # (nb, HW)
    pooled_s = jnp.concatenate([mean_s, max_s], axis=-1)   # (nb, 2*HW)
    logits = jnp.dot(pooled_s, m_ref[...],
                     preferred_element_type=jnp.float32) + cb_ref[0]
    w_s = _sigmoid(logits)                           # (nb, HW)

    out_ref[...] = (x_c * w_s[:, None, :].astype(x_c.dtype)).astype(out_ref.dtype)


def _build_conv_matrix(conv_w, H, W):
    """Bake the 7x7 / padding-3 conv (2 in-ch -> 1 out-ch) plus zero-padding
    validity into a dense (2*H*W, H*W) matrix M so that out = [mean | max] @ M."""
    HW = H * W
    out_i = np.repeat(np.arange(H), W)
    out_j = np.tile(np.arange(W), H)
    dst = out_i * W + out_j
    rows, cols, taps = [], [], []
    for c in range(2):
        for ki in range(_K):
            for kj in range(_K):
                si = out_i + ki - _P
                sj = out_j + kj - _P
                valid = (si >= 0) & (si < H) & (sj >= 0) & (sj < W)
                rows.append(c * HW + si[valid] * W + sj[valid])
                cols.append(dst[valid])
                taps.append(np.full(int(valid.sum()), c * _K * _K + ki * _K + kj))
    rows = np.concatenate(rows)
    cols = np.concatenate(cols)
    taps = np.concatenate(taps)
    cw_flat = conv_w.reshape(2 * _K * _K).astype(jnp.float32)
    return jnp.zeros((2 * HW, HW), jnp.float32).at[rows, cols].add(cw_flat[taps])


def cbam_forward(x, w1, w2, conv_w, conv_b, *, max_block_bytes=3 * 1024 * 1024):
    """CBAMBlock forward. x: (N, C, H, W); returns same shape/dtype."""
    N, C, H, W = x.shape
    HW = H * W
    hidden = w1.shape[0]

    x_flat = x.reshape(N, C, HW)                              # lane-dense, free reshape
    w1t = jnp.transpose(w1, (1, 0)).astype(jnp.float32)       # (C, hidden)
    w2t = jnp.transpose(w2, (1, 0)).astype(jnp.float32)       # (hidden, C)
    m = _build_conv_matrix(conv_w, H, W)                      # (2*HW, HW)
    cb = conv_b.reshape(-1).astype(jnp.float32)               # (1,)

    # Batch block size:
    #   * f32-equivalent block <= max_block_bytes so double-buffered in/out
    #     plus intermediates stay well inside 48 MiB scoped VMEM, even on
    #     v7x (64 MiB physical).
    #   * small enough that the parallel grid has >= min(N, 4) steps, so the
    #     pipeline prefetches/overlaps and both v7x TensorCores get work.
    per_elem_f32 = C * HW * 4
    target_steps = max(1, min(N, 4))
    nb_grid_cap = -(-N // target_steps)
    nb_vmem_cap = max(1, max_block_bytes // per_elem_f32)
    nb = int(max(1, min(N, nb_grid_cap, nb_vmem_cap)))
    grid = (pl.cdiv(N, nb),)
    # TODO(synk): for N == 1 on v7x, add a second "parallel" grid axis (split
    # HW into lane-aligned halves) so the second TensorCore is not idle.

    out = pl.pallas_call(
        _cbam_kernel,
        out_shape=jax.ShapeDtypeStruct((N, C, HW), x.dtype),
        grid=grid,
        in_specs=[
            pl.BlockSpec((nb, C, HW), lambda n: (n, 0, 0)),
            pl.BlockSpec((C, hidden), lambda n: (0, 0)),
            pl.BlockSpec((hidden, C), lambda n: (0, 0)),
            pl.BlockSpec((2 * HW, HW), lambda n: (0, 0)),
            pl.BlockSpec(memory_space=pltpu.MemorySpace.SMEM),
        ],
        out_specs=pl.BlockSpec((nb, C, HW), lambda n: (n, 0, 0)),
        compiler_params=pltpu.CompilerParams(
            dimension_semantics=("parallel",),
            vmem_limit_bytes=48 * 1024 * 1024),
    )(x_flat, w1t, w2t, m, cb)
    return out.reshape(N, C, H, W)


def _reference(x, w1, w2, conv_w, conv_b):
    # Pure-JAX reference reproducing the PyTorch forward (highest precision).
    avg = jnp.mean(x, axis=(2, 3), keepdims=True)
    mx = jnp.max(x, axis=(2, 3), keepdims=True)

    def mlp(v):
        v2 = v[:, :, 0, 0]
        h = jnp.maximum(
            jnp.einsum('nc,hc->nh', v2, w1, precision='highest'), 0.0)
        o = jnp.einsum('nh,ch->nc', h, w2, precision='highest')
        return o[:, :, None, None]

    w_c = _sigmoid(mlp(avg) + mlp(mx))
    x_c = x * w_c
    wa = jnp.mean(x_c, axis=1, keepdims=True)
    wm = jnp.max(x_c, axis=1, keepdims=True)
    w_s_in = jnp.concatenate([wa, wm], axis=1)                 # (N, 2, H, W)
    conv = jax.lax.conv_general_dilated(
        w_s_in, conv_w, window_strides=(1, 1), padding=((3, 3), (3, 3)),
        dimension_numbers=('NCHW', 'OIHW', 'NCHW'),
        precision=jax.lax.Precision.HIGHEST)
    conv = conv + conv_b[None, :, None, None]
    w_s = _sigmoid(conv)
    return x_c * w_s


if __name__ == "__main__":
    N, C, H, W = 2, 32, 16, 16
    reduction = 16
    hidden = C // reduction

    key = jax.random.PRNGKey(0)
    kx, k1, k2, k3, k4 = jax.random.split(key, 5)
    x = jax.random.normal(kx, (N, C, H, W), jnp.float32)
    w1 = jax.random.normal(k1, (hidden, C), jnp.float32) * 0.2
    w2 = jax.random.normal(k2, (C, hidden), jnp.float32) * 0.2
    conv_w = jax.random.normal(k3, (1, 2, 7, 7), jnp.float32) * 0.1
    conv_b = jax.random.normal(k4, (1,), jnp.float32) * 0.1

    out = cbam_forward(x, w1, w2, conv_w, conv_b)
    jax.block_until_ready(out)

    ref = _reference(x, w1, w2, conv_w, conv_b)
    err = float(jnp.max(jnp.abs(out - ref)))
    assert out.shape == (N, C, H, W), out.shape
    # Kernel matmuls run on the MXU (f32 may be rounded through bf16 passes),
    # while the reference uses HIGHEST precision; allow a small drift.  A real
    # bug (wrong conv matrix / transpose / padding) produces errors >> 2e-2.
    assert err < 2e-2, f"max abs error vs reference: {err}"
    print("KERNEL_OK")
</pallas_src>

<mosaic_0001>
module attributes {stable_mosaic.version = 11 : i64} {
  func.func @_cbam_kernel(%arg0: i32, %arg1: memref<1x32x256xf32, #tpu.memory_space<vmem>>, %arg2: memref<32x2xf32, #tpu.memory_space<vmem>>, %arg3: memref<2x32xf32, #tpu.memory_space<vmem>>, %arg4: memref<512x256xf32, #tpu.memory_space<vmem>>, %arg5: memref<1xf32, #tpu.memory_space<smem>>, %arg6: memref<1x32x256xf32, #tpu.memory_space<vmem>>) attributes {dimension_semantics = [#tpu.dimension_semantics<parallel>], iteration_bounds = array<i64: 2>, scalar_prefetch = 0 : i64, scratch_operands = 0 : i64, tpu.core_type = #tpu.core_type<tc>, window_params = [{transform_indices = @transform_0, window_bounds = array<i64: 1, 32, 256>}, {pipeline_mode = #tpu.pipeline_mode<synchronous>, transform_indices = @transform_1, window_bounds = array<i64: 32, 2>}, {pipeline_mode = #tpu.pipeline_mode<synchronous>, transform_indices = @transform_2, window_bounds = array<i64: 2, 32>}, {pipeline_mode = #tpu.pipeline_mode<synchronous>, transform_indices = @transform_3, window_bounds = array<i64: 512, 256>}, {transform_indices = @transform_4, window_bounds = array<i64: 1>}, {transform_indices = @transform_5, window_bounds = array<i64: 1, 32, 256>}]} {
    %c0 = arith.constant 0 : index
    %c0_0 = arith.constant 0 : index
    %c0_1 = arith.constant 0 : index
    %0 = vector.load %arg1[%c0, %c0_0, %c0_1] : memref<1x32x256xf32, #tpu.memory_space<vmem>>, vector<1x32x256xf32>
    %cst = arith.constant dense<0.000000e+00> : vector<1x32xf32>
    %1 = vector.multi_reduction <add>, %0, %cst [2] : vector<1x32x256xf32> to vector<1x32xf32>
    %cst_2 = arith.constant 2.560000e+02 : f32
    %2 = vector.broadcast %cst_2 : f32 to vector<1x32xf32>
    %3 = arith.divf %1, %2 : vector<1x32xf32>
    %cst_3 = arith.constant dense<0xFF800000> : vector<1x32xf32>
    %4 = vector.multi_reduction <maximumf>, %0, %cst_3 [2] : vector<1x32x256xf32> to vector<1x32xf32>
    %5 = tpu.concatenate %3, %4 in 0 : vector<1x32xf32>, vector<1x32xf32> -> vector<2x32xf32>
    %c0_4 = arith.constant 0 : index
    %c0_5 = arith.constant 0 : index
    %6 = vector.load %arg2[%c0_4, %c0_5] : memref<32x2xf32, #tpu.memory_space<vmem>>, vector<32x2xf32>
    %cst_6 = arith.constant dense<0.000000e+00> : vector<2x2xf32>
    %7 = tpu.matmul %5, %6, %cst_6 {dimension_numbers = #tpu.dot_dimension_numbers<[1], [0], [0], [1], [0, 0, 1, 1], [], []>} : vector<2x32xf32>, vector<32x2xf32>, vector<2x2xf32> -> vector<2x2xf32>
    %cst_7 = arith.constant 0.000000e+00 : f32
    %8 = vector.broadcast %cst_7 : f32 to vector<2x2xf32>
    %9 = arith.maximumf %7, %8 : vector<2x2xf32>
    %c0_8 = arith.constant 0 : index
    %c0_9 = arith.constant 0 : index
    %10 = vector.load %arg3[%c0_8, %c0_9] : memref<2x32xf32, #tpu.memory_space<vmem>>, vector<2x32xf32>
    %cst_10 = arith.constant dense<0.000000e+00> : vector<2x32xf32>
    %11 = tpu.matmul %9, %10, %cst_10 {dimension_numbers = #tpu.dot_dimension_numbers<[1], [0], [0], [1], [0, 0, 1, 1], [], []>} : vector<2x2xf32>, vector<2x32xf32>, vector<2x32xf32> -> vector<2x32xf32>
    %12 = vector.extract_strided_slice %11 {offsets = [0, 0], sizes = [1, 32], strides = [1, 1]} : vector<2x32xf32> to vector<1x32xf32>
    %13 = vector.extract_strided_slice %11 {offsets = [1, 0], sizes = [1, 32], strides = [1, 1]} : vector<2x32xf32> to vector<1x32xf32>
    %14 = arith.addf %12, %13 : vector<1x32xf32>
    %cst_11 = arith.constant 0.000000e+00 : f32
    %15 = vector.broadcast %cst_11 : f32 to vector<1x32xf32>
    %16 = arith.subf %15, %14 : vector<1x32xf32>
    %17 = math.exp %16 : vector<1x32xf32>
    %cst_12 = arith.constant 1.000000e+00 : f32
    %18 = vector.broadcast %cst_12 : f32 to vector<1x32xf32>
    %19 = arith.addf %18, %17 : vector<1x32xf32>
    %cst_13 = arith.constant 1.000000e+00 : f32
    %20 = vector.broadcast %cst_13 : f32 to vector<1x32xf32>
    %21 = arith.divf %20, %19 : vector<1x32xf32>
    %22 = vector.shape_cast %21 : vector<1x32xf32> to vector<1x32x1xf32>
    %23 = vector.broadcast %22 : vector<1x32x1xf32> to vector<1x32x256xf32>
    %24 = arith.mulf %0, %23 : vector<1x32x256xf32>
    %cst_14 = arith.constant dense<0.000000e+00> : vector<1x256xf32>
    %25 = vector.multi_reduction <add>, %24, %cst_14 [1] : vector<1x32x256xf32> to vector<1x256xf32>
    %cst_15 = arith.constant 3.200000e+01 : f32
    %26 = vector.broadcast %cst_15 : f32 to vector<1x256xf32>
    %27 = arith.divf %25, %26 : vector<1x256xf32>
    %cst_16 = arith.constant dense<0xFF800000> : vector<1x256xf32>
    %28 = vector.multi_reduction <maximumf>, %24, %cst_16 [1] : vector<1x32x256xf32> to vector<1x256xf32>
    %29 = tpu.concatenate %27, %28 in 1 : vector<1x256xf32>, vector<1x256xf32> -> vector<1x512xf32>
    %c0_17 = arith.constant 0 : index
    %c0_18 = arith.constant 0 : index
    %30 = vector.load %arg4[%c0_17, %c0_18] : memref<512x256xf32, #tpu.memory_space<vmem>>, vector<512x256xf32>
    %cst_19 = arith.constant dense<0.000000e+00> : vector<1x256xf32>
    %31 = tpu.matmul %29, %30, %cst_19 {dimension_numbers = #tpu.dot_dimension_numbers<[1], [0], [0], [1], [0, 0, 1, 1], [], []>} : vector<1x512xf32>, vector<512x256xf32>, vector<1x256xf32> -> vector<1x256xf32>
    %c0_20 = arith.constant 0 : index
    %32 = memref.load %arg5[%c0_20] : memref<1xf32, #tpu.memory_space<smem>>
    %33 = vector.broadcast %32 : f32 to vector<1x256xf32>
    %34 = arith.addf %31, %33 : vector<1x256xf32>
    %cst_21 = arith.constant 0.000000e+00 : f32
    %35 = vector.broadcast %cst_21 : f32 to vector<1x256xf32>
    %36 = arith.subf %35, %34 : vector<1x256xf32>
    %37 = math.exp %36 : vector<1x256xf32>
    %cst_22 = arith.constant 1.000000e+00 : f32
    %38 = vector.broadcast %cst_22 : f32 to vector<1x256xf32>
    %39 = arith.addf %38, %37 : vector<1x256xf32>
    %cst_23 = arith.constant 1.000000e+00 : f32
    %40 = vector.broadcast %cst_23 : f32 to vector<1x256xf32>
    %41 = arith.divf %40, %39 : vector<1x256xf32>
    %42 = vector.shape_cast %41 : vector<1x256xf32> to vector<1x1x256xf32>
    %43 = vector.broadcast %42 : vector<1x1x256xf32> to vector<1x32x256xf32>
    %44 = arith.mulf %24, %43 : vector<1x32x256xf32>
    %c0_24 = arith.constant 0 : index
    %c0_25 = arith.constant 0 : index
    %c0_26 = arith.constant 0 : index
    %45 = vector.load %arg6[%c0_24, %c0_25, %c0_26] : memref<1x32x256xf32, #tpu.memory_space<vmem>>, vector<1x32x256xf32>
    tpu.vector_store %arg6[%c0_24, %c0_25, %c0_26], %44 {strides = array<i32>} : memref<1x32x256xf32, #tpu.memory_space<vmem>>, vector<1x32x256xf32>,
    return
  }
  func.func @transform_0(%arg0: i32) -> (i32, i32, i32) {
    %c0_i32 = arith.constant 0 : i32
    %c0_i32_0 = arith.constant 0 : i32
    %c0_i32_1 = arith.constant 0 : i32
    return %arg0, %c0_i32, %c0_i32_0 : i32, i32, i32
  }
  func.func @transform_1(%arg0: i32) -> (i32, i32) {
    %c0_i32 = arith.constant 0 : i32
    %c0_i32_0 = arith.constant 0 : i32
    %c0_i32_1 = arith.constant 0 : i32
    return %c0_i32, %c0_i32_0 : i32, i32
  }
  func.func @transform_2(%arg0: i32) -> (i32, i32) {
    %c0_i32 = arith.constant 0 : i32
    %c0_i32_0 = arith.constant 0 : i32
    %c0_i32_1 = arith.constant 0 : i32
    return %c0_i32, %c0_i32_0 : i32, i32
  }
  func.func @transform_3(%arg0: i32) -> (i32, i32) {
    %c0_i32 = arith.constant 0 : i32
    %c0_i32_0 = arith.constant 0 : i32
    %c0_i32_1 = arith.constant 0 : i32
    return %c0_i32, %c0_i32_0 : i32, i32
  }
  func.func @transform_4(%arg0: i32) -> i32 {
    %c0_i32 = arith.constant 0 : i32
    %c0_i32_0 = arith.constant 0 : i32
    return %c0_i32 : i32
  }
  func.func @transform_5(%arg0: i32) -> (i32, i32, i32) {
    %c0_i32 = arith.constant 0 : i32
    %c0_i32_0 = arith.constant 0 : i32
    %c0_i32_1 = arith.constant 0 : i32
    return %arg0, %c0_i32, %c0_i32_0 : i32, i32, i32
  }
}

</mosaic_0001>

<llo_original>
// kernel: tpu_custom_call.1
$region0: #{tpu_custom_call.1}
  #allocation0 [shape = 'u32[]', space=smem, size = 0x4, offset = 0x4, fixed_abs, tag = 'smem constant byte address 0x4 - core index']
  #allocation1 [shape = 'u32[144,128]{1,0:T(1,128)}', space=vmem, size = 0x12000, scoped, tag = 'internal scratch']
  #allocation2 [shape = 'f32[1]{0:T(128)S(6)}', space=smem, size = 0x200, scoped, tag = 'scoped memory for tpu_custom_call.1']
  %s0 = inlined_call_operand.hbm [shape: f32[2,32,256], index: 0, kind: input, shape index: {}]
  %s1 = inlined_call_operand.vmem [shape: f32[32,2], index: 1, kind: input, shape index: {}]
  %s2 = inlined_call_operand.vmem [shape: f32[2,32], index: 2, kind: input, shape index: {}]
  %s3 = inlined_call_operand.hbm [shape: f32[512,256], index: 3, kind: input, shape index: {}]
  %s4 = inlined_call_operand.<no memory space> [shape: f32[1], index: 4, kind: input, shape index: {}]
  %s5 = inlined_call_operand.hbm [shape: f32[2,32,256], index: 5, kind: output, shape index: {}]
  %s6 = sld [smem:[#allocation0]]
  $region61: #{tpu_custom_call.1} parent=0
    _
  %s8 = ssub.s32 1, %s6
  %s9 = scalar_select 0, %s8, %s6
  %10 = sst [smem:[#allocation2]] %s4
  $region1: #{tpu_custom_call.1} parent=0
    #allocation3 [shape = 'u8[65536]{0}', space=vmem, size = 0x10000, scoped, tag = 'input window, operand 0']
    #allocation4 [shape = 's32[2]{0}', space=sflag, size = 0x8, scoped, tag = 'scoped memory for tpu_custom_call.1']
    #allocation5 [shape = 's32[2]{0}', space=sflag, size = 0x8, scoped, tag = 'scoped memory for tpu_custom_call.1']
    #allocation6 [shape = 'u8[524288]{0}', space=vmem, size = 0x80000, scoped, tag = 'input window, operand 3, single buffered']
    #allocation7 [shape = 's32[1]{0}', space=sflag, size = 0x4, scoped, tag = 'scoped memory for tpu_custom_call.1']
    #allocation8 [shape = 'u8[65536]{0}', space=vmem, size = 0x10000, scoped, tag = 'output window, operand 0']
    %11 = vsyncpa [#allocation4], 0
    %s12 = scalar_lea.sflag [#allocation4], 1
    %13 = vsyncpa %s12, 0
    %14 = vsyncpa [#allocation7], 0
    %15 = vsyncpa [#allocation5], 0
    %s16 = scalar_lea.sflag [#allocation5], 1
    %17 = vsyncpa %s16, 0
    loop: start=0, step=1, limit=4
    $region2: #{tpu_custom_call.1} parent=1 // loop_pre_header
      _
    $region3: #{tpu_custom_call.1} parent=1 // loop_header
      %s19 = sphi 0, %s23
      %p20 = scmp.ge.s32.totalorder %s19, 4
      %s29 = sphi 0, %s31
      %s32 = sphi 0, %s29
      %s33 = sphi 0, %s32
      %s49 = sphi 0, %s33
      %s53 = sphi 0, %s53
      %s55 = sphi 0, %s53
      %s56 = sphi 0, %s55
      %s70 = sphi 0, %s56
      %s74 = sphi 0, %s74
      %s76 = sphi 0, %s74
      %s77 = sphi 0, %s76
      %s91 = sphi 0, %s77
      %s95 = sphi 0, %s95
      %s97 = sphi 0, %s95
      %s98 = sphi 0, %s97
      %s112 = sphi 0, %s98
      %s116 = sphi 0, %s116
      %s118 = sphi 0, %s116
      %s119 = sphi 0, %s118
      %s133 = sphi 0, %s119
      %s139 = sphi 0, %s141
      %s142 = sphi 0, %s139
      %s143 = sphi 0, %s142
      %s159 = sphi 0, %s143
    $region4: #{tpu_custom_call.1} parent=1 // loop_header_branch
      %22 = sbr.rel (%p20) target = $region8
    $region5: #{tpu_custom_call.1} parent=1 // loop_body
      %s24 = ssub.s32 %s19, 1
      %s25 = ssub.s32 %s19, 2
      %s26 = sadd.s32 %s19, 1
      %s27 = ssub.s32 %s19, %s26
      %p28 = scmp.eq.s32.totalorder %s27, 0
      %s30 = sadd.s32 %s29, 1
      %s31 = scalar_select %p28, %s29, %s30
      %p34 = pneg %p28
      %p35 = scmp.eq.s32.totalorder %s19, 1
      %p36 = por %p34, %p35
      %p37 = scmp.ne.s32.totalorder %s29, %s32
      %p38 = scmp.eq.s32.totalorder %s19, 0
      %p39 = por %p37, %p38
      %p40 = scmp.ne.s32.totalorder %s29, %s32
      %p41 = scmp.eq.s32.totalorder %s24, 1
      %p42 = por %p40, %p41
      %p43 = scmp.ne.s32.totalorder %s32, %s33
      %p44 = scmp.eq.s32.totalorder %s24, 0
      %p45 = por %p43, %p44
      %p46 = scmp.ne.s32.totalorder %s32, %s33
      %p47 = scmp.eq.s32.totalorder %s25, 1
      %p48 = por %p46, %p47
      %p50 = scmp.ne.s32.totalorder %s33, %s49
      %p51 = scmp.eq.s32.totalorder %s25, 0
      %p52 = por %p50, %p51
      %s54 = sadd.s32 %s53, 1
      %p57 = scmp.eq.s32.totalorder %s19, 1
      %p58 = scmp.ne.s32.totalorder %s53, %s55
      %p59 = scmp.eq.s32.totalorder %s19, 0
      %p60 = por %p58, %p59
      %p61 = scmp.ne.s32.totalorder %s53, %s55
      %p62 = scmp.eq.s32.totalorder %s24, 1
      %p63 = por %p61, %p62
      %p64 = scmp.ne.s32.totalorder %s55, %s56
      %p65 = scmp.eq.s32.totalorder %s24, 0
      %p66 = por %p64, %p65
      %p67 = scmp.ne.s32.totalorder %s55, %s56
      %p68 = scmp.eq.s32.totalorder %s25, 1
      %p69 = por %p67, %p68
      %p71 = scmp.ne.s32.totalorder %s56, %s70
      %p72 = scmp.eq.s32.totalorder %s25, 0
      %p73 = por %p71, %p72
      %s75 = sadd.s32 %s74, 1
      %p78 = scmp.eq.s32.totalorder %s19, 1
      %p79 = scmp.ne.s32.totalorder %s74, %s76
      %p80 = scmp.eq.s32.totalorder %s19, 0
      %p81 = por %p79, %p80
      %p82 = scmp.ne.s32.totalorder %s74, %s76
      %p83 = scmp.eq.s32.totalorder %s24, 1
      %p84 = por %p82, %p83
      %p85 = scmp.ne.s32.totalorder %s76, %s77
      %p86 = scmp.eq.s32.totalorder %s24, 0
      %p87 = por %p85, %p86
      %p88 = scmp.ne.s32.totalorder %s76, %s77
      %p89 = scmp.eq.s32.totalorder %s25, 1
      %p90 = por %p88, %p89
      %p92 = scmp.ne.s32.totalorder %s77, %s91
      %p93 = scmp.eq.s32.totalorder %s25, 0
      %p94 = por %p92, %p93
      %s96 = sadd.s32 %s95, 1
      %p99 = scmp.eq.s32.totalorder %s19, 1
      %p100 = scmp.ne.s32.totalorder %s95, %s97
      %p101 = scmp.eq.s32.totalorder %s19, 0
      %p102 = por %p100, %p101
      %p103 = scmp.ne.s32.totalorder %s95, %s97
      %p104 = scmp.eq.s32.totalorder %s24, 1
      %p105 = por %p103, %p104
      %p106 = scmp.ne.s32.totalorder %s97, %s98
      %p107 = scmp.eq.s32.totalorder %s24, 0
      %p108 = por %p106, %p107
      %p109 = scmp.ne.s32.totalorder %s97, %s98
      %p110 = scmp.eq.s32.totalorder %s25, 1
      %p111 = por %p109, %p110
      %p113 = scmp.ne.s32.totalorder %s98, %s112
      %p114 = scmp.eq.s32.totalorder %s25, 0
      %p115 = por %p113, %p114
      %s117 = sadd.s32 %s116, 1
      %p120 = scmp.eq.s32.totalorder %s19, 1
      %p121 = scmp.ne.s32.totalorder %s116, %s118
      %p122 = scmp.eq.s32.totalorder %s19, 0
      %p123 = por %p121, %p122
      %p124 = scmp.ne.s32.totalorder %s116, %s118
      %p125 = scmp.eq.s32.totalorder %s24, 1
      %p126 = por %p124, %p125
      %p127 = scmp.ne.s32.totalorder %s118, %s119
      %p128 = scmp.eq.s32.totalorder %s24, 0
      %p129 = por %p127, %p128
      %p130 = scmp.ne.s32.totalorder %s118, %s119
      %p131 = scmp.eq.s32.totalorder %s25, 1
      %p132 = por %p130, %p131
      %p134 = scmp.ne.s32.totalorder %s119, %s133
      %p135 = scmp.eq.s32.totalorder %s25, 0
      %p136 = por %p134, %p135
      %s137 = ssub.s32 %s19, %s26
      %p138 = scmp.eq.s32.totalorder %s137, 0
      %s140 = sadd.s32 %s139, 1
      %s141 = scalar_select %p138, %s139, %s140
      %p144 = pneg %p138
      %p145 = scmp.eq.s32.totalorder %s19, 1
      %p146 = por %p144, %p145
      %p147 = scmp.ne.s32.totalorder %s139, %s142
      %p148 = scmp.eq.s32.totalorder %s19, 0
      %p149 = por %p147, %p148
      %p150 = scmp.ne.s32.totalorder %s139, %s142
      %p151 = scmp.eq.s32.totalorder %s24, 1
      %p152 = por %p150, %p151
      %p153 = scmp.ne.s32.totalorder %s142, %s143
      %p154 = scmp.eq.s32.totalorder %s24, 0
      %p155 = por %p153, %p154
      %p156 = scmp.ne.s32.totalorder %s142, %s143
      %p157 = scmp.eq.s32.totalorder %s25, 1
      %p158 = por %p156, %p157
      %p160 = scmp.ne.s32.totalorder %s143, %s159
      %p161 = scmp.eq.s32.totalorder %s25, 0
      %p162 = por %p160, %p161
      %p163 = scmp.le.s32.totalorder 1, %s19
      %p164 = scmp.lt.s32.totalorder %s19, 3
      %p165 = pnand %p163, %p164
      %p166 = pneg %p165
      // Predicated region
      $region9: #{tpu_custom_call.1} parent=5 // pred_check
        _
      $region10: #{tpu_custom_call.1} parent=5 // pred_check_branch
        %168 = sbr.rel (%p165) target = $region12
      $region11: #{tpu_custom_call.1} parent=5 // pred_region
        %s169 = ssub.s32 %s19, 1
        // Predicated region
        $region13: #{tpu_custom_call.1} parent=11 // pred_check
          %p170 = pneg %p66
        $region14: #{tpu_custom_call.1} parent=11 // pred_check_branch
          %172 = sbr.rel (%p170) target = $region16
        $region15: #{tpu_custom_call.1} parent=11 // pred_region
          _
        $region16: #{tpu_custom_call.1} parent=11 // pred_fallthru
          _
        // Predicated region
        $region17: #{tpu_custom_call.1} parent=11 // pred_check
          %p173 = pneg %p87
        $region18: #{tpu_custom_call.1} parent=11 // pred_check_branch
          %175 = sbr.rel (%p173) target = $region20
        $region19: #{tpu_custom_call.1} parent=11 // pred_region
          _
        $region20: #{tpu_custom_call.1} parent=11 // pred_fallthru
          _
        // Predicated region
        $region21: #{tpu_custom_call.1} parent=11 // pred_check
          %p176 = pneg %p108
        $region22: #{tpu_custom_call.1} parent=11 // pred_check_branch
          %178 = sbr.rel (%p176) target = $region24
        $region23: #{tpu_custom_call.1} parent=11 // pred_region
          %s180 = ssub.s32 16384, 16384
          %181 = vsyncadd [#allocation7], %s180
          %s182 = sshll.u32 [#allocation6], 4
          %s183 = int_to_ptr.vmem [resolvable:$true] %s182
          %188 = dma.hbm_to_vmem [thread:$0]  %s3, 16384, %s183, [#allocation7], 256, 256, 16
        $region24: #{tpu_custom_call.1} parent=11 // pred_fallthru
          _
        // Predicated region
        $region25: #{tpu_custom_call.1} parent=11 // pred_check
          %p189 = pneg %p129
        $region26: #{tpu_custom_call.1} parent=11 // pred_check_branch
          %191 = sbr.rel (%p189) target = $region28
        $region27: #{tpu_custom_call.1} parent=11 // pred_region
          _
        $region28: #{tpu_custom_call.1} parent=11 // pred_fallthru
          _
      $region12: #{tpu_custom_call.1} parent=5 // pred_fallthru
        _
      %p192 = scmp.lt.s32.totalorder %s19, 2
      // Predicated region
      $region29: #{tpu_custom_call.1} parent=5 // pred_check
        %p193 = pneg %p192
      $region30: #{tpu_custom_call.1} parent=5 // pred_check_branch
        %195 = sbr.rel (%p193) target = $region32
      $region31: #{tpu_custom_call.1} parent=5 // pred_region
        // Predicated region
        $region33: #{tpu_custom_call.1} parent=31 // pred_check
          %p196 = pneg %p39
        $region34: #{tpu_custom_call.1} parent=31 // pred_check_branch
          %198 = sbr.rel (%p196) target = $region36
        $region35: #{tpu_custom_call.1} parent=31 // pred_region
          %s199 = sand.u32 %s29, 1
          %s200 = scalar_lea.sflag [#allocation4], %s199
          %s201 = sand.u32 %s29, 1
          %s202 = smul.addr %s201, 64
          %s203 = scalar_lea.vmem [#allocation3], %s202
          %s205 = ssub.s32 1024, 1024
          %206 = vsyncadd %s200, %s205
          %s207 = smul.addr %s19, 8
          %s208 = smul.addr %s207, 128
          %s209 = scalar_lea.hbm %s0, %s208
          %s210 = sshll.u32 %s203, 4
          %s211 = int_to_ptr.vmem [resolvable:$true] %s210
          %216 = dma.hbm_to_vmem [thread:$0]  %s209, 1024, %s211, %s200, 256, 256, 16
        $region36: #{tpu_custom_call.1} parent=31 // pred_fallthru
          _
      $region32: #{tpu_custom_call.1} parent=5 // pred_fallthru
        _
      %p217 = scmp.le.s32.totalorder 1, %s19
      %p218 = scmp.lt.s32.totalorder %s19, 3
      %p219 = pnand %p217, %p218
      %p220 = pneg %p219
      // Predicated region
      $region37: #{tpu_custom_call.1} parent=5 // pred_check
        _
      $region38: #{tpu_custom_call.1} parent=5 // pred_check_branch
        %222 = sbr.rel (%p219) target = $region40
      $region39: #{tpu_custom_call.1} parent=5 // pred_region
        %s223 = ssub.s32 %s19, 1
        %s224 = sand.u32 %s32, 1
        %s225 = scalar_lea.sflag [#allocation4], %s224
        %s226 = sand.u32 %s32, 1
        %s227 = smul.addr %s226, 64
        %s228 = scalar_lea.vmem [#allocation3], %s227
        // Predicated region
        $region41: #{tpu_custom_call.1} parent=39 // pred_check
          %p229 = pneg %p45
        $region42: #{tpu_custom_call.1} parent=39 // pred_check_branch
          %231 = sbr.rel (%p229) target = $region44
        $region43: #{tpu_custom_call.1} parent=39 // pred_region
          %232 = dma.done %s225, 1024
        $region44: #{tpu_custom_call.1} parent=39 // pred_fallthru
          _
        // Predicated region
        $region45: #{tpu_custom_call.1} parent=39 // pred_check
          %p233 = pneg %p108
        $region46: #{tpu_custom_call.1} parent=39 // pred_check_branch
          %235 = sbr.rel (%p233) target = $region48
        $region47: #{tpu_custom_call.1} parent=39 // pred_region
          %236 = dma.done [#allocation7], 16384
        $region48: #{tpu_custom_call.1} parent=39 // pred_fallthru
          _
        %s237 = sand.u32 %s32, 1
        %s238 = scalar_lea.sflag [#allocation4], %s237
        %s239 = sand.u32 %s32, 1
        %s240 = smul.addr %s239, 64
        %s241 = scalar_lea.vmem [#allocation3], %s240
        %p242 = pneg %p45
        %p243 = pneg %p42
        %p244 = pneg %p66
        %p245 = pneg %p63
        %p246 = pneg %p87
        %p247 = pneg %p84
        %p248 = pneg %p108
        %p249 = pneg %p105
        %p250 = pneg %p129
        %p251 = pneg %p126
        %p252 = pneg %p155
        %p253 = pneg %p152
        %s254 = sand.u32 %s142, 1
        %s255 = scalar_lea.sflag [#allocation5], %s254
        %s256 = sand.u32 %s142, 1
        %s257 = smul.addr %s256, 64
        %s258 = scalar_lea.vmem [#allocation8], %s257
        %v259 = vld [vmem:[%s228] sm:$0xff]
        %v260 = vld [vmem:[%s228 + $0x8] sm:$0xff]
        %v261 = vld [vmem:[%s228 + $0x10] sm:$0xff]
        %v262 = vld [vmem:[%s228 + $0x18] sm:$0xff]
        %v263 = vld [vmem:[%s228 + $0x20] sm:$0xff]
        %v264 = vld [vmem:[%s228 + $0x28] sm:$0xff]
        %v265 = vld [vmem:[%s228 + $0x30] sm:$0xff]
        %v266 = vld [vmem:[%s228 + $0x38] sm:$0xff]
        %v267 = vadd.f32 %v259, %v260
        %268 = vadd.xlane.f32.xlu0 %v267
        %v269 = vpop.xlane.xlu0 %268
        %v270 = vadd.f32 %v261, %v262
        %271 = vadd.xlane.f32.xlu0 %v270
        %v272 = vpop.xlane.xlu0 %271
        %v273 = vadd.f32 %v263, %v264
        %274 = vadd.xlane.f32.xlu0 %v273
        %v275 = vpop.xlane.xlu0 %274
        %v276 = vadd.f32 %v265, %v266
        %277 = vadd.xlane.f32.xlu0 %v276
        %v278 = vpop.xlane.xlu0 %277
        %v279 = vrcp.pop 256.0
        %v280 = vmul.f32 %v269, %v279
        %v281 = vmul.f32 %v272, %v279
        %v282 = vmul.f32 %v275, %v279
        %v283 = vmul.f32 %v278, %v279
        %v284 = vmax.f32 %v259, %v260
        %285 = vmax.xlane.f32.xlu0 %v284
        %v286 = vpop.xlane.xlu0 %285
        %v287 = vmax.f32 %v261, %v262
        %288 = vmax.xlane.f32.xlu0 %v287
        %v289 = vpop.xlane.xlu0 %288
        %v290 = vmax.f32 %v263, %v264
        %291 = vmax.xlane.f32.xlu0 %v290
        %v292 = vpop.xlane.xlu0 %291
        %v293 = vmax.f32 %v265, %v266
        %294 = vmax.xlane.f32.xlu0 %v293
        %v295 = vpop.xlane.xlu0 %294
        %v300 = vlaneseq
        %v301 = vand.u32 %v300, 127
        %v302 = vlaneseq
        %v303 = vshrl.u32 %v302, 7
        %v304 = vsub.s32 %v301, %v303
        %v305 = vrot.slane %v280, %v304
        %v306 = vadd.s32 %v301, 4294967288
        %v307 = vlaneseq
        %v308 = vshrl.u32 %v307, 7
        %v309 = vsub.s32 %v306, %v308
        %v310 = vrot.slane %v281, %v309
        %vm311 = vcmask 130112
        %v312 = vsel %vm311, %v310, %v305
        %v313 = vadd.s32 %v301, 4294967280
        %v314 = vlaneseq
        %v315 = vshrl.u32 %v314, 7
        %v316 = vsub.s32 %v313, %v315
        %v317 = vrot.slane %v282, %v316
        %vm318 = vcmask 195712
        %v319 = vsel %vm318, %v317, %v312
        %v320 = vadd.s32 %v301, 4294967272
        %v321 = vlaneseq
        %v322 = vshrl.u32 %v321, 7
        %v323 = vsub.s32 %v320, %v322
        %v324 = vrot.slane %v283, %v323
        %vm325 = vcmask 261312
        %v326 = vsel %vm325, %v324, %v319
        %v332 = vlaneseq
        %v333 = vshrl.u32 %v332, 7
        %v334 = vsub.s32 %v301, %v333
        %v335 = vrot.slane %v286, %v334
        %v336 = vlaneseq
        %v337 = vshrl.u32 %v336, 7
        %v338 = vsub.s32 %v306, %v337
        %v339 = vrot.slane %v289, %v338
        %v340 = vsel %vm311, %v339, %v335
        %v341 = vlaneseq
        %v342 = vshrl.u32 %v341, 7
        %v343 = vsub.s32 %v313, %v342
        %v344 = vrot.slane %v292, %v343
        %v345 = vsel %vm318, %v344, %v340
        %v346 = vlaneseq
        %v347 = vshrl.u32 %v346, 7
        %v348 = vsub.s32 %v320, %v347
        %v349 = vrot.slane %v295, %v348
        %v350 = vsel %vm325, %v349, %v345
        %vm352 = vcmask 1040384
        %v353 = vsel %vm352, %v326, %v350
        %v354 = vld [vmem:[%s1] sm:$0xff]
        %v355 = vld [vmem:[%s1 + $0x8] sm:$0xff]
        %v356 = vld [vmem:[%s1 + $0x10] sm:$0xff]
        %v357 = vld [vmem:[%s1 + $0x18] sm:$0xff]
        %vm358 = vcmask 261120
        %v360 = vsel %vm358, %v353, 0
        %362 = vmatprep.subr.mxu0 0.0
        %363 = vmatpush1.msra.mxu0 0.0
        %364 = vmatprep.subr.mxu0 0.0
        %365 = vmatpush1.msra.mxu0 0.0
        %366 = vmatprep.subr.mxu0 0.0
        %367 = vmatpush1.msra.mxu0 0.0
        %368 = vmatprep.subr.mxu0 0.0
        %369 = vmatpush1.msra.mxu0 0.0
        %370 = vmatprep.subr.mxu0 0.0
        %371 = vmatpush1.msra.mxu0 0.0
        %372 = vmatprep.subr.mxu0 0.0
        %373 = vmatpush1.msra.mxu0 0.0
        %374 = vmatprep.subr.mxu0 0.0
        %375 = vmatpush1.msra.mxu0 0.0
        %376 = vmatprep.subr.mxu0 0.0
        %377 = vmatpush1.msra.mxu0 0.0
        %378 = vmatprep.subr.mxu0 0.0
        %379 = vmatpush1.msra.mxu0 0.0
        %380 = vmatprep.subr.mxu0 0.0
        %381 = vmatpush1.msra.mxu0 0.0
        %382 = vmatprep.subr.mxu0 0.0
        %383 = vmatpush1.msra.mxu0 0.0
        %384 = vmatprep.subr.mxu0 0.0
        %385 = vmatpush1.msra.mxu0 0.0
        %386 = vmatprep.subr.mxu0 0.0
        %387 = vmatpush1.msra.mxu0 %v357
        %388 = vmatprep.subr.mxu0 0.0
        %389 = vmatpush1.msra.mxu0 %v356
        %390 = vmatprep.subr.mxu0 0.0
        %391 = vmatpush1.msra.mxu0 %v355
        %392 = vmatprep.subr.mxu0 0.0
        %393 = vmatpush1.msra.mxu0 %v354
        %394 = vmatprep.subr.mxu0 0.0
        %395 = vmatpush2.msra.mxu0 0.0
        %396 = vmatprep.subr.mxu0 0.0
        %397 = vmatpush2.msra.mxu0 0.0
        %398 = vmatprep.subr.mxu0 0.0
        %399 = vmatpush2.msra.mxu0 0.0
        %400 = vmatprep.subr.mxu0 0.0
        %401 = vmatpush2.msra.mxu0 0.0
        %402 = vmatprep.subr.mxu0 0.0
        %403 = vmatpush2.msra.mxu0 0.0
        %404 = vmatprep.subr.mxu0 0.0
        %405 = vmatpush2.msra.mxu0 0.0
        %406 = vmatprep.subr.mxu0 0.0
        %407 = vmatpush2.msra.mxu0 0.0
        %408 = vmatprep.subr.mxu0 0.0
        %409 = vmatpush2.msra.mxu0 0.0
        %410 = vmatprep.subr.mxu0 0.0
        %411 = vmatpush2.msra.mxu0 0.0
        %412 = vmatprep.subr.mxu0 0.0
        %413 = vmatpush2.msra.mxu0 0.0
        %414 = vmatprep.subr.mxu0 0.0
        %415 = vmatpush2.msra.mxu0 0.0
        %416 = vmatprep.subr.mxu0 0.0
        %417 = vmatpush2.msra.mxu0 0.0
        %418 = vmatprep.subr.mxu0 0.0
        %419 = vmatpush2.msra.mxu0 0.0
        %420 = vmatprep.subr.mxu0 0.0
        %421 = vmatpush2.msra.mxu0 0.0
        %422 = vmatprep.subr.mxu0 0.0
        %423 = vmatpush2.msra.mxu0 0.0
        %424 = vmatprep.subr.mxu0 0.0
        %425 = vmatpush2.msra.mxu0 0.0
        %426 = vmatprep.mubr.f32.mxu0 0.0
        %427 = vmatmul.mubr.f32.gmra.mxu0 %v360
        %v428 = vpop.f32.mrf.mxu0
        %v429 = vadd.f32 0.0, %v428
        %v430 = vpop.f32.mrf.mxu0
        %431 = vdwg.mxu0
        %v432 = vmax.f32 %v429, 0.0
        %v433 = vld [vmem:[%s2] sm:$0x3]
        %vm434 = vcmask 15360
        %v436 = vsel %vm434, %v432, 0
        %vm438 = vcmask 1041408
        %v440 = vsel %vm438, %v433, 0
        %442 = vmatprep.subr.mxu0 0.0
        %443 = vmatpush1.msra.mxu0 0.0
        %444 = vmatprep.subr.mxu0 0.0
        %445 = vmatpush1.msra.mxu0 0.0
        %446 = vmatprep.subr.mxu0 0.0
        %447 = vmatpush1.msra.mxu0 0.0
        %448 = vmatprep.subr.mxu0 0.0
        %449 = vmatpush1.msra.mxu0 0.0
        %450 = vmatprep.subr.mxu0 0.0
        %451 = vmatpush1.msra.mxu0 0.0
        %452 = vmatprep.subr.mxu0 0.0
        %453 = vmatpush1.msra.mxu0 0.0
        %454 = vmatprep.subr.mxu0 0.0
        %455 = vmatpush1.msra.mxu0 0.0
        %456 = vmatprep.subr.mxu0 0.0
        %457 = vmatpush1.msra.mxu0 0.0
        %458 = vmatprep.subr.mxu0 0.0
        %459 = vmatpush1.msra.mxu0 0.0
        %460 = vmatprep.subr.mxu0 0.0
        %461 = vmatpush1.msra.mxu0 0.0
        %462 = vmatprep.subr.mxu0 0.0
        %463 = vmatpush1.msra.mxu0 0.0
        %464 = vmatprep.subr.mxu0 0.0
        %465 = vmatpush1.msra.mxu0 0.0
        %466 = vmatprep.subr.mxu0 0.0
        %467 = vmatpush1.msra.mxu0 0.0
        %468 = vmatprep.subr.mxu0 0.0
        %469 = vmatpush1.msra.mxu0 0.0
        %470 = vmatprep.subr.mxu0 0.0
        %471 = vmatpush1.msra.mxu0 0.0
        %472 = vmatprep.subr.mxu0 0.0
        %473 = vmatpush1.msra.mxu0 %v440
        %474 = vmatprep.subr.mxu0 0.0
        %475 = vmatpush2.msra.mxu0 0.0
        %476 = vmatprep.subr.mxu0 0.0
        %477 = vmatpush2.msra.mxu0 0.0
        %478 = vmatprep.subr.mxu0 0.0
        %479 = vmatpush2.msra.mxu0 0.0
        %480 = vmatprep.subr.mxu0 0.0
        %481 = vmatpush2.msra.mxu0 0.0
        %482 = vmatprep.subr.mxu0 0.0
        %483 = vmatpush2.msra.mxu0 0.0
        %484 = vmatprep.subr.mxu0 0.0
        %485 = vmatpush2.msra.mxu0 0.0
        %486 = vmatprep.subr.mxu0 0.0
        %487 = vmatpush2.msra.mxu0 0.0
        %488 = vmatprep.subr.mxu0 0.0
        %489 = vmatpush2.msra.mxu0 0.0
        %490 = vmatprep.subr.mxu0 0.0
        %491 = vmatpush2.msra.mxu0 0.0
        %492 = vmatprep.subr.mxu0 0.0
        %493 = vmatpush2.msra.mxu0 0.0
        %494 = vmatprep.subr.mxu0 0.0
        %495 = vmatpush2.msra.mxu0 0.0
        %496 = vmatprep.subr.mxu0 0.0
        %497 = vmatpush2.msra.mxu0 0.0
        %498 = vmatprep.subr.mxu0 0.0
        %499 = vmatpush2.msra.mxu0 0.0
        %500 = vmatprep.subr.mxu0 0.0
        %501 = vmatpush2.msra.mxu0 0.0
        %502 = vmatprep.subr.mxu0 0.0
        %503 = vmatpush2.msra.mxu0 0.0
        %504 = vmatprep.subr.mxu0 0.0
        %505 = vmatpush2.msra.mxu0 0.0
        %506 = vmatprep.mubr.f32.mxu0 0.0
        %507 = vmatmul.mubr.f32.gmra.mxu0 %v436
        %v508 = vpop.f32.mrf.mxu0
        %v509 = vadd.f32 0.0, %v508
        %v510 = vpop.f32.mrf.mxu0
        %511 = vdwg.mxu0
        %v513 = vrot.slane %v509, 1
        %v515 = vadd.f32 %v509, %v513
        %v516 = vsub.f32 0.0, %v515
        %v517 = vmul.f32 %v516, 1.442695
        %v518 = vpow.pop %v517
        %v519 = vadd.f32 %v518, 1.0
        %v520 = vrcp.pop %v519
        %v521 = vmul.f32 1.0, %v520
        %v522 = vlaneseq
        %v523 = vshrl.u32 %v522, 7
        %v524 = vsub.s32 0, %v523
        %v525 = vrot.slane %v521, %v524
        %527 = vbcast.lane.b32.xlu0 %v525, 256
        %v528 = vpop.permute.xlu0 %527
        %s530 = sor.u32 256, 8
        %531 = vbcast.lane.b32.xlu0 %v525, %s530
        %v532 = vpop.permute.xlu0 %531
        %s534 = sor.u32 256, 16
        %535 = vbcast.lane.b32.xlu0 %v525, %s534
        %v536 = vpop.permute.xlu0 %535
        %s538 = sor.u32 256, 24
        %539 = vbcast.lane.b32.xlu0 %v525, %s538
        %v540 = vpop.permute.xlu0 %539
        %v541 = vmul.f32 %v259, %v528
        %v542 = vmul.f32 %v260, %v528
        %v543 = vmul.f32 %v261, %v532
        %v544 = vmul.f32 %v262, %v532
        %v545 = vmul.f32 %v263, %v536
        %v546 = vmul.f32 %v264, %v536
        %v547 = vmul.f32 %v265, %v540
        %v548 = vmul.f32 %v266, %v540
        %v549 = vadd.f32 %v541, %v543
        %v550 = vadd.f32 %v549, %v545
        %v551 = vadd.f32 %v550, %v547
        %v552 = vrot.slane %v551, 4
        %v553 = vadd.f32 %v551, %v552
        %v554 = vrot.slane %v553, 2
        %v555 = vadd.f32 %v553, %v554
        %v556 = vrot.slane %v555, 1
        %v557 = vadd.f32 %v555, %v556
        %v558 = vadd.f32 %v542, %v544
        %v559 = vadd.f32 %v558, %v546
        %v560 = vadd.f32 %v559, %v548
        %v561 = vrot.slane %v560, 4
        %v562 = vadd.f32 %v560, %v561
        %v563 = vrot.slane %v562, 2
        %v564 = vadd.f32 %v562, %v563
        %v565 = vrot.slane %v564, 1
        %v566 = vadd.f32 %v564, %v565
        %v567 = vrcp.pop 32.0
        %v568 = vmul.f32 %v557, %v567
        %v569 = vmul.f32 %v566, %v567
        %v570 = vmax.f32 %v541, %v545
        %v571 = vmax.f32 %v543, %v547
        %v572 = vmax.f32 %v570, %v571
        %v573 = vrot.slane %v572, 4
        %v574 = vmax.f32 %v572, %v573
        %v575 = vrot.slane %v574, 2
        %v576 = vmax.f32 %v574, %v575
        %v577 = vrot.slane %v576, 1
        %v578 = vmax.f32 %v576, %v577
        %v579 = vmax.f32 %v542, %v546
        %v580 = vmax.f32 %v544, %v548
        %v581 = vmax.f32 %v579, %v580
        %v582 = vrot.slane %v581, 4
        %v583 = vmax.f32 %v581, %v582
        %v584 = vrot.slane %v583, 2
        %v585 = vmax.f32 %v583, %v584
        %v586 = vrot.slane %v585, 1
        %v587 = vmax.f32 %v585, %v586
        %v588 = vld [vmem:[#allocation6] sm:$0xff]
        %v589 = vld [vmem:[#allocation6 + $0x8] sm:$0xff]
        %v590 = vld [vmem:[#allocation6 + $0x10] sm:$0xff]
        %v591 = vld [vmem:[#allocation6 + $0x18] sm:$0xff]
        %v592 = vld [vmem:[#allocation6 + $0x20] sm:$0xff]
        %v593 = vld [vmem:[#allocation6 + $0x28] sm:$0xff]
        %v594 = vld [vmem:[#allocation6 + $0x30] sm:$0xff]
        %v595 = vld [vmem:[#allocation6 + $0x38] sm:$0xff]
        %v596 = vld [vmem:[#allocation6 + $0x40] sm:$0xff]
        %v597 = vld [vmem:[#allocation6 + $0x48] sm:$0xff]
        %v598 = vld [vmem:[#allocation6 + $0x50] sm:$0xff]
        %v599 = vld [vmem:[#allocation6 + $0x58] sm:$0xff]
        %v600 = vld [vmem:[#allocation6 + $0x60] sm:$0xff]
        %v601 = vld [vmem:[#allocation6 + $0x68] sm:$0xff]
        %v602 = vld [vmem:[#allocation6 + $0x70] sm:$0xff]
        %v603 = vld [vmem:[#allocation6 + $0x78] sm:$0xff]
        %v604 = vld [vmem:[#allocation6 + $0x80] sm:$0xff]
        %v605 = vld [vmem:[#allocation6 + $0x88] sm:$0xff]
        %v606 = vld [vmem:[#allocation6 + $0x90] sm:$0xff]
        %v607 = vld [vmem:[#allocation6 + $0x98] sm:$0xff]
        %v608 = vld [vmem:[#allocation6 + $0xa0] sm:$0xff]
        %v609 = vld [vmem:[#allocation6 + $0xa8] sm:$0xff]
        %v610 = vld [vmem:[#allocation6 + $0xb0] sm:$0xff]
        %v611 = vld [vmem:[#allocation6 + $0xb8] sm:$0xff]
        %v612 = vld [vmem:[#allocation6 + $0xc0] sm:$0xff]
        %v613 = vld [vmem:[#allocation6 + $0xc8] sm:$0xff]
        %v614 = vld [vmem:[#allocation6 + $0xd0] sm:$0xff]
        %v615 = vld [vmem:[#allocation6 + $0xd8] sm:$0xff]
        %v616 = vld [vmem:[#allocation6 + $0xe0] sm:$0xff]
        %v617 = vld [vmem:[#allocation6 + $0xe8] sm:$0xff]
        %v618 = vld [vmem:[#allocation6 + $0xf0] sm:$0xff]
        %v619 = vld [vmem:[#allocation6 + $0xf8] sm:$0xff]
        %v620 = vld [vmem:[#allocation6 + $0x100] sm:$0xff]
        %v621 = vld [vmem:[#allocation6 + $0x108] sm:$0xff]
        %v622 = vld [vmem:[#allocation6 + $0x110] sm:$0xff]
        %v623 = vld [vmem:[#allocation6 + $0x118] sm:$0xff]
        %v624 = vld [vmem:[#allocation6 + $0x120] sm:$0xff]
        %v625 = vld [vmem:[#allocation6 + $0x128] sm:$0xff]
        %v626 = vld [vmem:[#allocation6 + $0x130] sm:$0xff]
        %v627 = vld [vmem:[#allocation6 + $0x138] sm:$0xff]
        %v628 = vld [vmem:[#allocation6 + $0x140] sm:$0xff]
        %v629 = vld [vmem:[#allocation6 + $0x148] sm:$0xff]
        %v630 = vld [vmem:[#allocation6 + $0x150] sm:$0xff]
        %v631 = vld [vmem:[#allocation6 + $0x158] sm:$0xff]
        %v632 = vld [vmem:[#allocation6 + $0x160] sm:$0xff]
        %v633 = vld [vmem:[#allocation6 + $0x168] sm:$0xff]
        %v634 = vld [vmem:[#allocation6 + $0x170] sm:$0xff]
        %v635 = vld [vmem:[#allocation6 + $0x178] sm:$0xff]
        %v636 = vld [vmem:[#allocation6 + $0x180] sm:$0xff]
        %v637 = vld [vmem:[#allocation6 + $0x188] sm:$0xff]
        %v638 = vld [vmem:[#allocation6 + $0x190] sm:$0xff]
        %v639 = vld [vmem:[#allocation6 + $0x198] sm:$0xff]
        %v640 = vld [vmem:[#allocation6 + $0x1a0] sm:$0xff]
        %v641 = vld [vmem:[#allocation6 + $0x1a8] sm:$0xff]
        %v642 = vld [vmem:[#allocation6 + $0x1b0] sm:$0xff]
        %v643 = vld [vmem:[#allocation6 + $0x1b8] sm:$0xff]
        %v644 = vld [vmem:[#allocation6 + $0x1c0] sm:$0xff]
        %v645 = vld [vmem:[#allocation6 + $0x1c8] sm:$0xff]
        %v646 = vld [vmem:[#allocation6 + $0x1d0] sm:$0xff]
        %v647 = vld [vmem:[#allocation6 + $0x1d8] sm:$0xff]
        %v648 = vld [vmem:[#allocation6 + $0x1e0] sm:$0xff]
        %v649 = vld [vmem:[#allocation6 + $0x1e8] sm:$0xff]
        %v650 = vld [vmem:[#allocation6 + $0x1f0] sm:$0xff]
        %v651 = vld [vmem:[#allocation6 + $0x1f8] sm:$0xff]
        %v652 = vld [vmem:[#allocation6 + $0x200] sm:$0xff]
        %v653 = vld [vmem:[#allocation6 + $0x208] sm:$0xff]
        %v654 = vld [vmem:[#allocation6 + $0x210] sm:$0xff]
        %v655 = vld [vmem:[#allocation6 + $0x218] sm:$0xff]
        %v656 = vld [vmem:[#allocation6 + $0x220] sm:$0xff]
        %v657 = vld [vmem:[#allocation6 + $0x228] sm:$0xff]
        %v658 = vld [vmem:[#allocation6 + $0x230] sm:$0xff]
        %v659 = vld [vmem:[#allocation6 + $0x238] sm:$0xff]
        %v660 = vld [vmem:[#allocation6 + $0x240] sm:$0xff]
        %v661 = vld [vmem:[#allocation6 + $0x248] sm:$0xff]
        %v662 = vld [vmem:[#allocation6 + $0x250] sm:$0xff]
        %v663 = vld [vmem:[#allocation6 + $0x258] sm:$0xff]
        %v664 = vld [vmem:[#allocation6 + $0x260] sm:$0xff]
        %v665 = vld [vmem:[#allocation6 + $0x268] sm:$0xff]
        %v666 = vld [vmem:[#allocation6 + $0x270] sm:$0xff]
        %v667 = vld [vmem:[#allocation6 + $0x278] sm:$0xff]
        %v668 = vld [vmem:[#allocation6 + $0x280] sm:$0xff]
        %v669 = vld [vmem:[#allocation6 + $0x288] sm:$0xff]
        %v670 = vld [vmem:[#allocation6 + $0x290] sm:$0xff]
        %v671 = vld [vmem:[#allocation6 + $0x298] sm:$0xff]
        %v672 = vld [vmem:[#allocation6 + $0x2a0] sm:$0xff]
        %v673 = vld [vmem:[#allocation6 + $0x2a8] sm:$0xff]
        %v674 = vld [vmem:[#allocation6 + $0x2b0] sm:$0xff]
        %v675 = vld [vmem:[#allocation6 + $0x2b8] sm:$0xff]
        %v676 = vld [vmem:[#allocation6 + $0x2c0] sm:$0xff]
        %v677 = vld [vmem:[#allocation6 + $0x2c8] sm:$0xff]
        %v678 = vld [vmem:[#allocation6 + $0x2d0] sm:$0xff]
        %v679 = vld [vmem:[#allocation6 + $0x2d8] sm:$0xff]
        %v680 = vld [vmem:[#allocation6 + $0x2e0] sm:$0xff]
        %v681 = vld [vmem:[#allocation6 + $0x2e8] sm:$0xff]
        %v682 = vld [vmem:[#allocation6 + $0x2f0] sm:$0xff]
        %v683 = vld [vmem:[#allocation6 + $0x2f8] sm:$0xff]
        %v684 = vld [vmem:[#allocation6 + $0x300] sm:$0xff]
        %v685 = vld [vmem:[#allocation6 + $0x308] sm:$0xff]
        %v686 = vld [vmem:[#allocation6 + $0x310] sm:$0xff]
        %v687 = vld [vmem:[#allocation6 + $0x318] sm:$0xff]
        %v688 = vld [vmem:[#allocation6 + $0x320] sm:$0xff]
        %v689 = vld [vmem:[#allocation6 + $0x328] sm:$0xff]
        %v690 = vld [vmem:[#allocation6 + $0x330] sm:$0xff]
        %v691 = vld [vmem:[#allocation6 + $0x338] sm:$0xff]
        %v692 = vld [vmem:[#allocation6 + $0x340] sm:$0xff]
        %v693 = vld [vmem:[#allocation6 + $0x348] sm:$0xff]
        %v694 = vld [vmem:[#allocation6 + $0x350] sm:$0xff]
        %v695 = vld [vmem:[#allocation6 + $0x358] sm:$0xff]
        %v696 = vld [vmem:[#allocation6 + $0x360] sm:$0xff]
        %v697 = vld [vmem:[#allocation6 + $0x368] sm:$0xff]
        %v698 = vld [vmem:[#allocation6 + $0x370] sm:$0xff]
        %v699 = vld [vmem:[#allocation6 + $0x378] sm:$0xff]
        %v700 = vld [vmem:[#allocation6 + $0x380] sm:$0xff]
        %v701 = vld [vmem:[#allocation6 + $0x388] sm:$0xff]
        %v702 = vld [vmem:[#allocation6 + $0x390] sm:$0xff]
        %v703 = vld [vmem:[#allocation6 + $0x398] sm:$0xff]
        %v704 = vld [vmem:[#allocation6 + $0x3a0] sm:$0xff]
        %v705 = vld [vmem:[#allocation6 + $0x3a8] sm:$0xff]
        %v706 = vld [vmem:[#allocation6 + $0x3b0] sm:$0xff]
        %v707 = vld [vmem:[#allocation6 + $0x3b8] sm:$0xff]
        %v708 = vld [vmem:[#allocation6 + $0x3c0] sm:$0xff]
        %v709 = vld [vmem:[#allocation6 + $0x3c8] sm:$0xff]
        %v710 = vld [vmem:[#allocation6 + $0x3d0] sm:$0xff]
        %v711 = vld [vmem:[#allocation6 + $0x3d8] sm:$0xff]
        %v712 = vld [vmem:[#allocation6 + $0x3e0] sm:$0xff]
        %v713 = vld [vmem:[#allocation6 + $0x3e8] sm:$0xff]
        %v714 = vld [vmem:[#allocation6 + $0x3f0] sm:$0xff]
        %v715 = vld [vmem:[#allocation6 + $0x3f8] sm:$0xff]
        %s716 = sld [smem:[#allocation2]]
        %v717 = vstv %s716
        %718 = vmatprep.subr.mxu0 %v619
        %719 = vmatpush1.msra.mxu0 %v618
        %720 = vmatprep.subr.mxu0 %v617
        %721 = vmatpush1.msra.mxu0 %v616
        %722 = vmatprep.subr.mxu0 %v615
        %723 = vmatpush1.msra.mxu0 %v614
        %724 = vmatprep.subr.mxu0 %v613
        %725 = vmatpush1.msra.mxu0 %v612
        %726 = vmatprep.subr.mxu0 %v611
        %727 = vmatpush1.msra.mxu0 %v610
        %728 = vmatprep.subr.mxu0 %v609
        %729 = vmatpush1.msra.mxu0 %v608
        %730 = vmatprep.subr.mxu0 %v607
        %731 = vmatpush1.msra.mxu0 %v606
        %732 = vmatprep.subr.mxu0 %v605
        %733 = vmatpush1.msra.mxu0 %v604
        %734 = vmatprep.subr.mxu0 %v603
        %735 = vmatpush1.msra.mxu0 %v602
        %736 = vmatprep.subr.mxu0 %v601
        %737 = vmatpush1.msra.mxu0 %v600
        %738 = vmatprep.subr.mxu0 %v599
        %739 = vmatpush1.msra.mxu0 %v598
        %740 = vmatprep.subr.mxu0 %v597
        %741 = vmatpush1.msra.mxu0 %v596
        %742 = vmatprep.subr.mxu0 %v595
        %743 = vmatpush1.msra.mxu0 %v594
        %744 = vmatprep.subr.mxu0 %v593
        %745 = vmatpush1.msra.mxu0 %v592
        %746 = vmatprep.subr.mxu0 %v591
        %747 = vmatpush1.msra.mxu0 %v590
        %748 = vmatprep.subr.mxu0 %v589
        %749 = vmatpush1.msra.mxu0 %v588
        %750 = vmatprep.subr.mxu0 %v651
        %751 = vmatpush2.msra.mxu0 %v650
        %752 = vmatprep.subr.mxu0 %v649
        %753 = vmatpush2.msra.mxu0 %v648
        %754 = vmatprep.subr.mxu0 %v647
        %755 = vmatpush2.msra.mxu0 %v646
        %756 = vmatprep.subr.mxu0 %v645
        %757 = vmatpush2.msra.mxu0 %v644
        %758 = vmatprep.subr.mxu0 %v643
        %759 = vmatpush2.msra.mxu0 %v642
        %760 = vmatprep.subr.mxu0 %v641
        %761 = vmatpush2.msra.mxu0 %v640
        %762 = vmatprep.subr.mxu0 %v639
        %763 = vmatpush2.msra.mxu0 %v638
        %764 = vmatprep.subr.mxu0 %v637
        %765 = vmatpush2.msra.mxu0 %v636
        %766 = vmatprep.subr.mxu0 %v635
        %767 = vmatpush2.msra.mxu0 %v634
        %768 = vmatprep.subr.mxu0 %v633
        %769 = vmatpush2.msra.mxu0 %v632
        %770 = vmatprep.subr.mxu0 %v631
        %771 = vmatpush2.msra.mxu0 %v630
        %772 = vmatprep.subr.mxu0 %v629
        %773 = vmatpush2.msra.mxu0 %v628
        %774 = vmatprep.subr.mxu0 %v627
        %775 = vmatpush2.msra.mxu0 %v626
        %776 = vmatprep.subr.mxu0 %v625
        %777 = vmatpush2.msra.mxu0 %v624
        %778 = vmatprep.subr.mxu0 %v623
        %779 = vmatpush2.msra.mxu0 %v622
        %780 = vmatprep.subr.mxu0 %v621
        %781 = vmatpush2.msra.mxu0 %v620
        %782 = vmatprep.mubr.f32.mxu0 %v569
        %783 = vmatmul.mubr.f32.gmra.mxu0 %v568
        %v784 = vpop.f32.mrf.mxu0
        %v785 = vadd.f32 %v717, %v784
        %v786 = vpop.f32.mrf.mxu0
        %v787 = vadd.f32 %v717, %v786
        %788 = vdwg.mxu0
        %789 = vmatprep.subr.mxu0 %v683
        %790 = vmatpush1.msra.mxu0 %v682
        %791 = vmatprep.subr.mxu0 %v681
        %792 = vmatpush1.msra.mxu0 %v680
        %793 = vmatprep.subr.mxu0 %v679
        %794 = vmatpush1.msra.mxu0 %v678
        %795 = vmatprep.subr.mxu0 %v677
        %796 = vmatpush1.msra.mxu0 %v676
        %797 = vmatprep.subr.mxu0 %v675
        %798 = vmatpush1.msra.mxu0 %v674
        %799 = vmatprep.subr.mxu0 %v673
        %800 = vmatpush1.msra.mxu0 %v672
        %801 = vmatprep.subr.mxu0 %v671
        %802 = vmatpush1.msra.mxu0 %v670
        %803 = vmatprep.subr.mxu0 %v669
        %804 = vmatpush1.msra.mxu0 %v668
        %805 = vmatprep.subr.mxu0 %v667
        %806 = vmatpush1.msra.mxu0 %v666
        %807 = vmatprep.subr.mxu0 %v665
        %808 = vmatpush1.msra.mxu0 %v664
        %809 = vmatprep.subr.mxu0 %v663
        %810 = vmatpush1.msra.mxu0 %v662
        %811 = vmatprep.subr.mxu0 %v661
        %812 = vmatpush1.msra.mxu0 %v660
        %813 = vmatprep.subr.mxu0 %v659
        %814 = vmatpush1.msra.mxu0 %v658
        %815 = vmatprep.subr.mxu0 %v657
        %816 = vmatpush1.msra.mxu0 %v656
        %817 = vmatprep.subr.mxu0 %v655
        %818 = vmatpush1.msra.mxu0 %v654
        %819 = vmatprep.subr.mxu0 %v653
        %820 = vmatpush1.msra.mxu0 %v652
        %821 = vmatprep.subr.mxu0 %v715
        %822 = vmatpush2.msra.mxu0 %v714
        %823 = vmatprep.subr.mxu0 %v713
        %824 = vmatpush2.msra.mxu0 %v712
        %825 = vmatprep.subr.mxu0 %v711
        %826 = vmatpush2.msra.mxu0 %v710
        %827 = vmatprep.subr.mxu0 %v709
        %828 = vmatpush2.msra.mxu0 %v708
        %829 = vmatprep.subr.mxu0 %v707
        %830 = vmatpush2.msra.mxu0 %v706
        %831 = vmatprep.subr.mxu0 %v705
        %832 = vmatpush2.msra.mxu0 %v704
        %833 = vmatprep.subr.mxu0 %v703
        %834 = vmatpush2.msra.mxu0 %v702
        %835 = vmatprep.subr.mxu0 %v701
        %836 = vmatpush2.msra.mxu0 %v700
        %837 = vmatprep.subr.mxu0 %v699
        %838 = vmatpush2.msra.mxu0 %v698
        %839 = vmatprep.subr.mxu0 %v697
        %840 = vmatpush2.msra.mxu0 %v696
        %841 = vmatprep.subr.mxu0 %v695
        %842 = vmatpush2.msra.mxu0 %v694
        %843 = vmatprep.subr.mxu0 %v693
        %844 = vmatpush2.msra.mxu0 %v692
        %845 = vmatprep.subr.mxu0 %v691
        %846 = vmatpush2.msra.mxu0 %v690
        %847 = vmatprep.subr.mxu0 %v689
        %848 = vmatpush2.msra.mxu0 %v688
        %849 = vmatprep.subr.mxu0 %v687
        %850 = vmatpush2.msra.mxu0 %v686
        %851 = vmatprep.subr.mxu0 %v685
        %852 = vmatpush2.msra.mxu0 %v684
        %853 = vmatprep.mubr.f32.mxu0 %v587
        %854 = vmatmul.mubr.f32.gmra.mxu0 %v578
        %v855 = vpop.f32.mrf.mxu0
        %v856 = vadd.f32 %v785, %v855
        %v857 = vpop.f32.mrf.mxu0
        %v858 = vadd.f32 %v787, %v857
        %859 = vdwg.mxu0
        %v860 = vsub.f32 0.0, %v856
        %v861 = vsub.f32 0.0, %v858
        %v862 = vmul.f32 %v860, 1.442695
        %v863 = vpow.pop %v862
        %v864 = vmul.f32 %v861, 1.442695
        %v865 = vpow.pop %v864
        %v866 = vadd.f32 %v863, 1.0
        %v867 = vadd.f32 %v865, 1.0
        %v868 = vrcp.pop %v866
        %v869 = vmul.f32 1.0, %v868
        %v870 = vrcp.pop %v867
        %v871 = vmul.f32 1.0, %v870
        %v872 = vlaneseq
        %v873 = vshrl.u32 %v872, 7
        %v874 = vsub.s32 0, %v873
        %v875 = vrot.slane %v869, %v874
        %v876 = vlaneseq
        %v877 = vshrl.u32 %v876, 7
        %v878 = vsub.s32 0, %v877
        %v879 = vrot.slane %v871, %v878
        %v880 = vmul.f32 %v541, %v875
        %v881 = vmul.f32 %v542, %v879
        %v882 = vmul.f32 %v543, %v875
        %v883 = vmul.f32 %v544, %v879
        %v884 = vmul.f32 %v545, %v875
        %v885 = vmul.f32 %v546, %v879
        %v886 = vmul.f32 %v547, %v875
        %v887 = vmul.f32 %v548, %v879
        %888 = vst [vmem:[%s258] sm:$0xff] %v880
        %889 = vst [vmem:[%s258 + $0x8] sm:$0xff] %v881
        %890 = vst [vmem:[%s258 + $0x10] sm:$0xff] %v882
        %891 = vst [vmem:[%s258 + $0x18] sm:$0xff] %v883
        %892 = vst [vmem:[%s258 + $0x20] sm:$0xff] %v884
        %893 = vst [vmem:[%s258 + $0x28] sm:$0xff] %v885
        %894 = vst [vmem:[%s258 + $0x30] sm:$0xff] %v886
        %895 = vst [vmem:[%s258 + $0x38] sm:$0xff] %v887
        %s896 = sand.u32 %s142, 1
        %s897 = scalar_lea.sflag [#allocation5], %s896
        %s898 = sand.u32 %s142, 1
        %s899 = smul.addr %s898, 64
        %s900 = scalar_lea.vmem [#allocation8], %s899
        // Predicated region
        $region49: #{tpu_custom_call.1} parent=39 // pred_check
          %p901 = pneg %p152
        $region50: #{tpu_custom_call.1} parent=39 // pred_check_branch
          %903 = sbr.rel (%p901) target = $region52
        $region51: #{tpu_custom_call.1} parent=39 // pred_region
          %s905 = ssub.s32 1024, 1024
          %906 = vsyncadd %s897, %s905
          %s907 = smul.addr %s24, 8
          %s908 = smul.addr %s907, 128
          %s909 = scalar_lea.hbm %s5, %s908
          %s910 = sshll.u32 %s900, 4
          %s911 = int_to_ptr.vmem [resolvable:$true] %s910
          %916 = dma.vmem_to_hbm [thread:$0]  %s911, 1024, %s909, %s897, 256, 256, 16
        $region52: #{tpu_custom_call.1} parent=39 // pred_fallthru
          _
      $region40: #{tpu_custom_call.1} parent=5 // pred_fallthru
        _
      %p917 = scmp.le.s32.totalorder 2, %s19
      // Predicated region
      $region53: #{tpu_custom_call.1} parent=5 // pred_check
        %p918 = pneg %p917
      $region54: #{tpu_custom_call.1} parent=5 // pred_check_branch
        %920 = sbr.rel (%p918) target = $region56
      $region55: #{tpu_custom_call.1} parent=5 // pred_region
        %s921 = ssub.s32 %s19, 2
        // Predicated region
        $region57: #{tpu_custom_call.1} parent=55 // pred_check
          %p922 = pneg %p158
        $region58: #{tpu_custom_call.1} parent=55 // pred_check_branch
          %924 = sbr.rel (%p922) target = $region60
        $region59: #{tpu_custom_call.1} parent=55 // pred_region
          %s925 = sand.u32 %s143, 1
          %s926 = scalar_lea.sflag [#allocation5], %s925
          %s927 = sand.u32 %s143, 1
          %s928 = smul.addr %s927, 64
          %s929 = scalar_lea.vmem [#allocation8], %s928
          %930 = dma.done %s926, 1024
        $region60: #{tpu_custom_call.1} parent=55 // pred_fallthru
          _
      $region56: #{tpu_custom_call.1} parent=5 // pred_fallthru
        _
    $region6: #{tpu_custom_call.1} parent=1 // loop_footer
      %s23 = sadd.s32 1, %s19
    $region7: #{tpu_custom_call.1} parent=1 // loop_footer_branch
      %18 = sbr.rel target = $region3
    $region8: #{tpu_custom_call.1} parent=1 // loop_exit
      _
    %931 = vsyncpa [#allocation4], 1
    %s932 = scalar_lea.sflag [#allocation4], 1
    %933 = vsyncpa %s932, 1
    %934 = vsyncpa [#allocation7], 1
    %935 = vsyncpa [#allocation5], 1
    %s936 = scalar_lea.sflag [#allocation5], 1
    %937 = vsyncpa %s936, 1

</llo_original>
